<compile_context>
chip_gen: v5e
topology: v5e:2x2
jax: 0.10.0
libtpu: 0.0.40
codegen_flags: <defaults>
</compile_context>

<pallas_src>
import functools

import jax
import jax.numpy as jnp
from jax import lax
from jax.experimental import pallas as pl
from jax.experimental.pallas import tpu as pltpu

LANE = 128  # TPU lane width.


def _round_up(n, m):
    return ((n + m - 1) // m) * m


# ----------------------------------------------------------------------------
# Parameter preparation (runs ONCE, at parameter-load time, not per call).
# ----------------------------------------------------------------------------
def prepare_ssm_params(wx, wu, wd, bx, bu, bd, *, weight_dtype=jnp.float32):
    """Fuse + pad the SSM parameters once.

    Weight layout is [in_features, out_features], i.e. the TRANSPOSE of
    PyTorch nn.Linear.weight (which is stored [out_features, in_features]).
      wx: [nx, nx]   wu: [nu, nx]   wd: [nd, nx]
      bx, bu, bd: [nx] or [1, nx]

    Returns a dict with
      w_fused : [3*LANE, Np]  fused weights+bias for the single-step kernel,
                rows laid out to match the in-kernel z slab:
                  rows [0,nx)              <- wx        (x segment, lanes [0,nx))
                  row  nx                  <- bx+bu+bd  (bias column, lane nx)
                  rows [LANE, LANE+nu)     <- wu        (u segment)
                  rows [2*LANE, 2*LANE+nd) <- wd        (d segment)
      wx_p, wu_p, wd_p, b_p : split/padded params for the fused-scan kernel.
    """
    nx = wx.shape[1]
    nu, nd = wu.shape[0], wd.shape[0]
    assert wx.shape == (nx, nx) and wu.shape == (nu, nx) and wd.shape == (nd, nx), (
        "weights must be [in_features, out_features] "
        "(pass PyTorch nn.Linear.weight.T)")
    assert nx < LANE and nu <= LANE and nd <= LANE, "small-model layout assumed"

    f32 = jnp.float32
    b_sum = (jnp.asarray(bx, f32).reshape(1, nx)
             + jnp.asarray(bu, f32).reshape(1, nx)
             + jnp.asarray(bd, f32).reshape(1, nx))
    Np = _round_up(nx, LANE)

    # Split / padded params for the fused-scan kernel (bias kept in f32).
    wx_p = jnp.zeros((Np, Np), f32).at[:nx, :nx].set(wx).astype(weight_dtype)
    wu_p = jnp.zeros((nu, Np), f32).at[:, :nx].set(wu).astype(weight_dtype)
    wd_p = jnp.zeros((nd, Np), f32).at[:, :nx].set(wd).astype(weight_dtype)
    b_p = jnp.zeros((1, Np), f32).at[:, :nx].set(b_sum)

    # Single fused matrix (weights + bias row) for the one-step kernel.
    Kp = 3 * LANE
    w_fused = jnp.zeros((Kp, Np), f32)
    w_fused = w_fused.at[0:nx, :nx].set(wx)
    w_fused = w_fused.at[nx, :nx].set(b_sum[0])          # bias row <-> ones col
    w_fused = w_fused.at[LANE:LANE + nu, :nx].set(wu)
    w_fused = w_fused.at[2 * LANE:2 * LANE + nd, :nx].set(wd)
    w_fused = w_fused.astype(weight_dtype)

    return dict(w_fused=w_fused, wx_p=wx_p, wu_p=wu_p, wd_p=wd_p, b_p=b_p)


# ----------------------------------------------------------------------------
# Single-step kernel: exactly the module's forward().  One MXU matmul.
# ----------------------------------------------------------------------------
def _ssm_step_kernel(x_ref, u_ref, d_ref, w_ref, out_ref, z_scr):
    nx = x_ref.shape[1]
    nu = u_ref.shape[1]
    nd = d_ref.shape[1]
    B, Kp = z_scr.shape
    bias_col = nx  # lives in the unused tail of the x segment

    # Background fill: zeros everywhere except 1.0 in the bias column
    # (single full-slab store; the bias column is never overwritten below).
    col = lax.broadcasted_iota(jnp.int32, (B, Kp), 1)
    z_scr[...] = jnp.where(col == bias_col, 1.0, 0.0).astype(z_scr.dtype)

    # Segment-aligned assembly: each store starts at a lane offset that is a
    # multiple of LANE, so no lane rotation is needed.
    z_scr[:, 0:nx] = x_ref[...].astype(z_scr.dtype)
    z_scr[:, LANE:LANE + nu] = u_ref[...].astype(z_scr.dtype)
    z_scr[:, 2 * LANE:2 * LANE + nd] = d_ref[...].astype(z_scr.dtype)

    # One fused MXU matmul; bias comes from the ones column.
    acc = jnp.dot(z_scr[...].astype(w_ref.dtype), w_ref[...],
                  preferred_element_type=jnp.float32)
    out_ref[...] = acc[:, :nx].astype(out_ref.dtype)


@jax.jit
def ssm_forward(x, u, d, w_fused):
    """x:[B,nx] u:[B,nu] d:[B,nd], fused/padded weights -> x_next:[B,nx]."""
    B, nx = x.shape
    nu, nd = u.shape[1], d.shape[1]
    Kp, Np = w_fused.shape
    return pl.pallas_call(
        _ssm_step_kernel,
        out_shape=jax.ShapeDtypeStruct((B, nx), x.dtype),
        grid=(1,),
        in_specs=[
            pl.BlockSpec((B, nx), lambda i: (0, 0)),
            pl.BlockSpec((B, nu), lambda i: (0, 0)),
            pl.BlockSpec((B, nd), lambda i: (0, 0)),
            pl.BlockSpec((Kp, Np), lambda i: (0, 0)),
        ],
        out_specs=pl.BlockSpec((B, nx), lambda i: (0, 0)),
        scratch_shapes=[pltpu.VMEM((B, Kp), jnp.float32)],
    )(x, u, d, w_fused)


# ----------------------------------------------------------------------------
# Fused time recurrence: the module's forward applied T times inside ONE
# pallas_call.  State carried in VMEM scratch, params pinned, u/d streamed.
# ----------------------------------------------------------------------------
def _ssm_scan_kernel(x0_ref, u_ref, d_ref, wx_ref, wu_ref, wd_ref, b_ref,
                     out_ref, x_state):
    tb, B, nu = u_ref.shape
    nd = d_ref.shape[-1]
    nx = x0_ref.shape[1]
    Np = x_state.shape[1]

    # Initialise the carried state (padded [B, Np] layout) on the first block.
    @pl.when(pl.program_id(0) == 0)
    def _init():
        x_state[...] = jnp.zeros_like(x_state)
        x_state[:, 0:nx] = x0_ref[...].astype(x_state.dtype)

    # Input/bias contribution for ALL tb steps of this block at once — this is
    # independent of the state, so it stays OFF the serial critical path and
    # fills the MXU M dimension (tb*B rows).
    u2 = u_ref[...].reshape(tb * B, nu)
    d2 = d_ref[...].reshape(tb * B, nd)
    c = (jnp.dot(u2.astype(wu_ref.dtype), wu_ref[...],
                 preferred_element_type=jnp.float32)
         + jnp.dot(d2.astype(wd_ref.dtype), wd_ref[...],
                   preferred_element_type=jnp.float32)
         + b_ref[...].astype(jnp.float32))                    # (tb*B, Np)

    # Serial recurrence over the block: one tiny matmul + add per step.
    wx = wx_ref[...]
    x_car = x_state[...]
    for t in range(tb):  # tb is static & small -> fully unrolled
        x_car = (jnp.dot(x_car.astype(wx.dtype), wx,
                         preferred_element_type=jnp.float32)
                 + c[t * B:(t + 1) * B, :]).astype(x_state.dtype)
        out_ref[t] = x_car.astype(out_ref.dtype)
    x_state[...] = x_car


@functools.partial(jax.jit, static_argnames=("tb",))
def ssm_scan(x0, u_seq, d_seq, wx_p, wu_p, wd_p, b_p, *, tb=16):
    """Runs x_{t+1} = fx(x_t) + fu(u_t) + fd(d_t), t = 0..T-1.

    x0:[B,nx], u_seq:[T,B,nu], d_seq:[T,B,nd] -> trajectory [T,B,nx]
    (entry t is the state AFTER step t).
    """
    T, B, nu = u_seq.shape
    nd = d_seq.shape[-1]
    nx = x0.shape[1]
    Np = wx_p.shape[1]
    assert T % tb == 0, "T must be a multiple of the time-block size"

    out_padded = pl.pallas_call(
        _ssm_scan_kernel,
        out_shape=jax.ShapeDtypeStruct((T, B, Np), x0.dtype),
        grid=(T // tb,),
        in_specs=[
            pl.BlockSpec((B, nx), lambda i: (0, 0)),           # x0 (pinned)
            pl.BlockSpec((tb, B, nu), lambda i: (i, 0, 0)),    # u stream
            pl.BlockSpec((tb, B, nd), lambda i: (i, 0, 0)),    # d stream
            pl.BlockSpec((Np, Np), lambda i: (0, 0)),          # wx (pinned)
            pl.BlockSpec((nu, Np), lambda i: (0, 0)),          # wu (pinned)
            pl.BlockSpec((nd, Np), lambda i: (0, 0)),          # wd (pinned)
            pl.BlockSpec((1, Np), lambda i: (0, 0)),           # bias (pinned)
        ],
        out_specs=pl.BlockSpec((tb, B, Np), lambda i: (i, 0, 0)),
        scratch_shapes=[pltpu.VMEM((B, Np), jnp.float32)],     # carried state
        compiler_params=pltpu.CompilerParams(
            dimension_semantics=("arbitrary",)),               # sequential time
        # Total resident VMEM here is ~300 KiB — far under every generation's
        # limit (incl. v7x's 64 MiB); no vmem_limit_bytes override needed.
    )(x0, u_seq, d_seq, wx_p, wu_p, wd_p, b_p)
    return out_padded[..., :nx]  # single slice at the very end


# ----------------------------------------------------------------------------
# Pure-JAX references
# ----------------------------------------------------------------------------
def ssm_step_reference(x, u, d, wx, wu, wd, bx, bu, bd):
    return (x @ wx + bx) + (u @ wu + bu) + (d @ wd + bd)


def ssm_scan_reference(x0, u_seq, d_seq, wx, wu, wd, bx, bu, bd):
    def step(x, inp):
        u, d = inp
        xn = ssm_step_reference(x, u, d, wx, wu, wd, bx, bu, bd)
        return xn, xn

    _, xs = lax.scan(step, x0, (u_seq, d_seq))
    return xs


if __name__ == "__main__":
    # Small shapes consistent with the module: nx + nu + nd inputs, nx outputs.
    B, nx, nu, nd = 8, 32, 16, 8
    T, Tb = 64, 16
    key = jax.random.PRNGKey(0)
    ks = jax.random.split(key, 11)

    x0 = jax.random.normal(ks[0], (B, nx), dtype=jnp.float32)
    u1 = jax.random.normal(ks[1], (B, nu), dtype=jnp.float32)
    d1 = jax.random.normal(ks[2], (B, nd), dtype=jnp.float32)
    u_seq = jax.random.normal(ks[3], (T, B, nu), dtype=jnp.float32)
    d_seq = jax.random.normal(ks[4], (T, B, nd), dtype=jnp.float32)

    # Deterministic Linear-like init, stored as [in_features, out_features].
    def init_linear(kw, kb, fan_in, fan_out):
        bound = 1.0 / jnp.sqrt(jnp.float32(fan_in))
        w = jax.random.uniform(kw, (fan_in, fan_out), jnp.float32, -bound, bound)
        b = jax.random.uniform(kb, (1, fan_out), jnp.float32, -bound, bound)
        return w, b

    wx, bx = init_linear(ks[5], ks[6], nx, nx)
    wu, bu = init_linear(ks[7], ks[8], nu, nx)
    wd, bd = init_linear(ks[9], ks[10], nd, nx)

    # Parameter prep (once, outside the per-call path).
    params = jax.block_until_ready(prepare_ssm_params(wx, wu, wd, bx, bu, bd))

    # --- single step: exactly the module's forward() --------------------------
    out1 = jax.block_until_ready(ssm_forward(x0, u1, d1, params["w_fused"]))
    ref1 = ssm_step_reference(x0, u1, d1, wx, wu, wd, bx, bu, bd)
    assert out1.shape == (B, nx)
    assert jnp.allclose(out1, ref1, atol=1e-5, rtol=1e-5), "single-step mismatch"

    # --- fused time recurrence (forward applied T times inside one kernel) ---
    traj = jax.block_until_ready(
        ssm_scan(x0, u_seq, d_seq, params["wx_p"], params["wu_p"],
                 params["wd_p"], params["b_p"], tb=Tb))
    ref_traj = ssm_scan_reference(x0, u_seq, d_seq, wx, wu, wd, bx, bu, bd)
    assert traj.shape == (T, B, nx)
    # f32 accumulation-order differences compound over the 64-step recurrence;
    # a loose-but-bug-catching tolerance is used here.
    assert jnp.allclose(traj, ref_traj, atol=1e-3, rtol=1e-3), "scan mismatch"

    print("KERNEL_OK")
</pallas_src>

<mosaic_0001>
module attributes {stable_mosaic.version = 11 : i64} {
  func.func @_ssm_step_kernel(%arg0: i32, %arg1: memref<8x32xf32, #tpu.memory_space<vmem>>, %arg2: memref<8x16xf32, #tpu.memory_space<vmem>>, %arg3: memref<8x8xf32, #tpu.memory_space<vmem>>, %arg4: memref<384x128xf32, #tpu.memory_space<vmem>>, %arg5: memref<8x32xf32, #tpu.memory_space<vmem>>, %arg6: memref<8x384xf32, #tpu.memory_space<vmem>>) attributes {dimension_semantics = [#tpu.dimension_semantics<arbitrary>], iteration_bounds = array<i64: 1>, scalar_prefetch = 0 : i64, scratch_operands = 1 : i64, tpu.core_type = #tpu.core_type<tc>, window_params = [{pipeline_mode = #tpu.pipeline_mode<synchronous>, transform_indices = @transform_0, window_bounds = array<i64: 8, 32>}, {pipeline_mode = #tpu.pipeline_mode<synchronous>, transform_indices = @transform_1, window_bounds = array<i64: 8, 16>}, {pipeline_mode = #tpu.pipeline_mode<synchronous>, transform_indices = @transform_2, window_bounds = array<i64: 8, 8>}, {pipeline_mode = #tpu.pipeline_mode<synchronous>, transform_indices = @transform_3, window_bounds = array<i64: 384, 128>}, {pipeline_mode = #tpu.pipeline_mode<synchronous>, transform_indices = @transform_4, window_bounds = array<i64: 8, 32>}]} {
    %0 = tpu.iota {dimensions = array<i32: 1>} : vector<8x384xi32>
    %c32_i32 = arith.constant 32 : i32
    %1 = vector.broadcast %c32_i32 : i32 to vector<8x384xi32>
    %2 = arith.cmpi eq, %0, %1 : vector<8x384xi32>
    %cst = arith.constant 1.000000e+00 : f32
    %cst_0 = arith.constant 0.000000e+00 : f32
    %3 = vector.broadcast %cst : f32 to vector<8x384xf32>
    %4 = vector.broadcast %cst_0 : f32 to vector<8x384xf32>
    %5 = arith.select %2, %3, %4 : vector<8x384xi1>, vector<8x384xf32>
    %c0 = arith.constant 0 : index
    %c0_1 = arith.constant 0 : index
    %6 = vector.load %arg6[%c0, %c0_1] : memref<8x384xf32, #tpu.memory_space<vmem>>, vector<8x384xf32>
    tpu.vector_store %arg6[%c0, %c0_1], %5 {strides = array<i32>} : memref<8x384xf32, #tpu.memory_space<vmem>>, vector<8x384xf32>,
    %c0_2 = arith.constant 0 : index
    %c0_3 = arith.constant 0 : index
    %7 = vector.load %arg1[%c0_2, %c0_3] : memref<8x32xf32, #tpu.memory_space<vmem>>, vector<8x32xf32>
    %c0_4 = arith.constant 0 : index
    %c0_5 = arith.constant 0 : index
    %8 = vector.load %arg6[%c0_4, %c0_5] : memref<8x384xf32, #tpu.memory_space<vmem>>, vector<8x32xf32>
    tpu.vector_store %arg6[%c0_4, %c0_5], %7 {strides = array<i32>} : memref<8x384xf32, #tpu.memory_space<vmem>>, vector<8x32xf32>,
    %c0_6 = arith.constant 0 : index
    %c0_7 = arith.constant 0 : index
    %9 = vector.load %arg2[%c0_6, %c0_7] : memref<8x16xf32, #tpu.memory_space<vmem>>, vector<8x16xf32>
    %c0_8 = arith.constant 0 : index
    %c128 = arith.constant 128 : index
    %10 = vector.load %arg6[%c0_8, %c128] : memref<8x384xf32, #tpu.memory_space<vmem>>, vector<8x16xf32>
    tpu.vector_store %arg6[%c0_8, %c128], %9 {strides = array<i32>} : memref<8x384xf32, #tpu.memory_space<vmem>>, vector<8x16xf32>,
    %c0_9 = arith.constant 0 : index
    %c0_10 = arith.constant 0 : index
    %11 = vector.load %arg3[%c0_9, %c0_10] : memref<8x8xf32, #tpu.memory_space<vmem>>, vector<8x8xf32>
    %c0_11 = arith.constant 0 : index
    %c256 = arith.constant 256 : index
    %12 = vector.load %arg6[%c0_11, %c256] : memref<8x384xf32, #tpu.memory_space<vmem>>, vector<8x8xf32>
    tpu.vector_store %arg6[%c0_11, %c256], %11 {strides = array<i32>} : memref<8x384xf32, #tpu.memory_space<vmem>>, vector<8x8xf32>,
    %c0_12 = arith.constant 0 : index
    %c0_13 = arith.constant 0 : index
    %13 = vector.load %arg6[%c0_12, %c0_13] : memref<8x384xf32, #tpu.memory_space<vmem>>, vector<8x384xf32>
    %c0_14 = arith.constant 0 : index
    %c0_15 = arith.constant 0 : index
    %14 = vector.load %arg4[%c0_14, %c0_15] : memref<384x128xf32, #tpu.memory_space<vmem>>, vector<384x128xf32>
    %cst_16 = arith.constant dense<0.000000e+00> : vector<8x128xf32>
    %15 = tpu.matmul %13, %14, %cst_16 {dimension_numbers = #tpu.dot_dimension_numbers<[1], [0], [0], [1], [0, 0, 1, 1], [], []>} : vector<8x384xf32>, vector<384x128xf32>, vector<8x128xf32> -> vector<8x128xf32>
    %16 = vector.extract_strided_slice %15 {offsets = [0, 0], sizes = [8, 32], strides = [1, 1]} : vector<8x128xf32> to vector<8x32xf32>
    %c0_17 = arith.constant 0 : index
    %c0_18 = arith.constant 0 : index
    %17 = vector.load %arg5[%c0_17, %c0_18] : memref<8x32xf32, #tpu.memory_space<vmem>>, vector<8x32xf32>
    tpu.vector_store %arg5[%c0_17, %c0_18], %16 {strides = array<i32>} : memref<8x32xf32, #tpu.memory_space<vmem>>, vector<8x32xf32>,
    return
  }
  func.func @transform_0(%arg0: i32) -> (i32, i32) {
    %c0_i32 = arith.constant 0 : i32
    %c0_i32_0 = arith.constant 0 : i32
    %c0_i32_1 = arith.constant 0 : i32
    return %c0_i32, %c0_i32_0 : i32, i32
  }
  func.func @transform_1(%arg0: i32) -> (i32, i32) {
    %c0_i32 = arith.constant 0 : i32
    %c0_i32_0 = arith.constant 0 : i32
    %c0_i32_1 = arith.constant 0 : i32
    return %c0_i32, %c0_i32_0 : i32, i32
  }
  func.func @transform_2(%arg0: i32) -> (i32, i32) {
    %c0_i32 = arith.constant 0 : i32
    %c0_i32_0 = arith.constant 0 : i32
    %c0_i32_1 = arith.constant 0 : i32
    return %c0_i32, %c0_i32_0 : i32, i32
  }
  func.func @transform_3(%arg0: i32) -> (i32, i32) {
    %c0_i32 = arith.constant 0 : i32
    %c0_i32_0 = arith.constant 0 : i32
    %c0_i32_1 = arith.constant 0 : i32
    return %c0_i32, %c0_i32_0 : i32, i32
  }
  func.func @transform_4(%arg0: i32) -> (i32, i32) {
    %c0_i32 = arith.constant 0 : i32
    %c0_i32_0 = arith.constant 0 : i32
    %c0_i32_1 = arith.constant 0 : i32
    return %c0_i32, %c0_i32_0 : i32, i32
  }
}

</mosaic_0001>

<llo_original>
// kernel: ssm_forward.1
$region0: #{ssm_forward.1}
  #allocation0 [shape = 'u32[]', space=smem, size = 0x4, offset = 0x4, fixed_abs, tag = 'smem constant byte address 0x4 - core index']
  #allocation1 [shape = 'u32[72,128]{1,0:T(1,128)}', space=vmem, size = 0x9000, scoped, tag = 'internal scratch']
  #allocation2 [shape = 'f32[8,384]{1,0:T(8,128)}', space=vmem, size = 0x3000, scoped, tag = 'scratch operand']
  %s0 = inlined_call_operand.hbm [shape: f32[8,32], index: 0, kind: input, shape index: {}]
  %s1 = inlined_call_operand.hbm [shape: f32[8,16], index: 1, kind: input, shape index: {}]
  %s2 = inlined_call_operand.hbm [shape: f32[8,8], index: 2, kind: input, shape index: {}]
  %s3 = inlined_call_operand.hbm [shape: f32[384,128], index: 3, kind: input, shape index: {}]
  %s4 = inlined_call_operand.hbm [shape: f32[8,32], index: 4, kind: output, shape index: {}]
  %s5 = sld [smem:[#allocation0]]
  $region42: #{ssm_forward.1} parent=0
    _
  %s7 = ssub.s32 1, %s5
  %s8 = scalar_select 0, %s7, %s5
  $region1: #{ssm_forward.1} parent=0
    #allocation3 [shape = 'u8[4096]{0}', space=vmem, size = 0x1000, scoped, tag = 'input window, operand 0, single buffered']
    #allocation4 [shape = 's32[1]{0}', space=sflag, size = 0x4, scoped, tag = 'scoped memory for ssm_forward.1']
    #allocation5 [shape = 's32[1]{0}', space=sflag, size = 0x4, scoped, tag = 'scoped memory for ssm_forward.1']
    #allocation6 [shape = 'u8[4096]{0}', space=vmem, size = 0x1000, scoped, tag = 'input window, operand 1, single buffered']
    #allocation7 [shape = 's32[1]{0}', space=sflag, size = 0x4, scoped, tag = 'scoped memory for ssm_forward.1']
    #allocation8 [shape = 'u8[4096]{0}', space=vmem, size = 0x1000, scoped, tag = 'input window, operand 2, single buffered']
    #allocation9 [shape = 'u8[196608]{0}', space=vmem, size = 0x30000, scoped, tag = 'input window, operand 3, single buffered']
    #allocation10 [shape = 's32[1]{0}', space=sflag, size = 0x4, scoped, tag = 'scoped memory for ssm_forward.1']
    #allocation11 [shape = 'u8[4096]{0}', space=vmem, size = 0x1000, scoped, tag = 'output window, operand 0, single buffered']
    %9 = vsyncpa [#allocation4], 0
    %10 = vsyncpa [#allocation7], 0
    %11 = vsyncpa [#allocation10], 0
    %12 = vsyncpa [#allocation5], 0
    // Predicated region
    $region2: #{ssm_forward.1} parent=1 // pred_check
      _
    $region3: #{ssm_forward.1} parent=1 // pred_check_branch
      %14 = sbr.rel (0) target = $region5
    $region4: #{ssm_forward.1} parent=1 // pred_region
      %16 = vsyncadd [#allocation4], 0
      %s18 = sshll.u32 %s0, 4
      %s19 = int_to_ptr.hbm [resolvable:$true] %s18
      %s20 = sshll.u32 [#allocation3], 4
      %s21 = int_to_ptr.vmem [resolvable:$true] %s20
      %23 = dma.hbm_to_vmem [thread:$0]  %s19, 128, %s21, [#allocation4]
    $region5: #{ssm_forward.1} parent=1 // pred_fallthru
      _
    // Predicated region
    $region6: #{ssm_forward.1} parent=1 // pred_check
      _
    $region7: #{ssm_forward.1} parent=1 // pred_check_branch
      %25 = sbr.rel (0) target = $region9
    $region8: #{ssm_forward.1} parent=1 // pred_region
      %27 = vsyncadd [#allocation7], 0
      %s29 = sshll.u32 %s1, 4
      %s30 = int_to_ptr.hbm [resolvable:$true] %s29
      %s31 = sshll.u32 [#allocation6], 4
      %s32 = int_to_ptr.vmem [resolvable:$true] %s31
      %34 = dma.hbm_to_vmem [thread:$0]  %s30, 128, %s32, [#allocation7]
    $region9: #{ssm_forward.1} parent=1 // pred_fallthru
      _
    // Predicated region
    $region10: #{ssm_forward.1} parent=1 // pred_check
      _
    $region11: #{ssm_forward.1} parent=1 // pred_check_branch
      %36 = sbr.rel (0) target = $region13
    $region12: #{ssm_forward.1} parent=1 // pred_region
      %38 = vsyncadd [#allocation7], 0
      %s40 = sshll.u32 %s2, 4
      %s41 = int_to_ptr.hbm [resolvable:$true] %s40
      %s42 = sshll.u32 [#allocation8], 4
      %s43 = int_to_ptr.vmem [resolvable:$true] %s42
      %45 = dma.hbm_to_vmem [thread:$0]  %s41, 128, %s43, [#allocation7]
    $region13: #{ssm_forward.1} parent=1 // pred_fallthru
      _
    // Predicated region
    $region14: #{ssm_forward.1} parent=1 // pred_check
      _
    $region15: #{ssm_forward.1} parent=1 // pred_check_branch
      %47 = sbr.rel (0) target = $region17
    $region16: #{ssm_forward.1} parent=1 // pred_region
      %49 = vsyncadd [#allocation10], 0
      %s50 = sshll.u32 %s3, 4
      %s51 = int_to_ptr.hbm [resolvable:$true] %s50
      %s52 = sshll.u32 [#allocation9], 4
      %s53 = int_to_ptr.vmem [resolvable:$true] %s52
      %58 = dma.hbm_to_vmem [thread:$0]  %s51, 6144, %s53, [#allocation10], 128, 128, 8
    $region17: #{ssm_forward.1} parent=1 // pred_fallthru
      _
    // Predicated region
    $region18: #{ssm_forward.1} parent=1 // pred_check
      _
    $region19: #{ssm_forward.1} parent=1 // pred_check_branch
      %60 = sbr.rel (0) target = $region21
    $region20: #{ssm_forward.1} parent=1 // pred_region
      %62 = dma.done [#allocation4], 128
    $region21: #{ssm_forward.1} parent=1 // pred_fallthru
      _
    // Predicated region
    $region22: #{ssm_forward.1} parent=1 // pred_check
      _
    $region23: #{ssm_forward.1} parent=1 // pred_check_branch
      %64 = sbr.rel (0) target = $region25
    $region24: #{ssm_forward.1} parent=1 // pred_region
      %66 = dma.done [#allocation7], 128
    $region25: #{ssm_forward.1} parent=1 // pred_fallthru
      _
    // Predicated region
    $region26: #{ssm_forward.1} parent=1 // pred_check
      _
    $region27: #{ssm_forward.1} parent=1 // pred_check_branch
      %68 = sbr.rel (0) target = $region29
    $region28: #{ssm_forward.1} parent=1 // pred_region
      %70 = dma.done [#allocation7], 128
    $region29: #{ssm_forward.1} parent=1 // pred_fallthru
      _
    // Predicated region
    $region30: #{ssm_forward.1} parent=1 // pred_check
      _
    $region31: #{ssm_forward.1} parent=1 // pred_check_branch
      %72 = sbr.rel (0) target = $region33
    $region32: #{ssm_forward.1} parent=1 // pred_region
      %74 = dma.done [#allocation10], 6144
    $region33: #{ssm_forward.1} parent=1 // pred_fallthru
      _
    %v75 = vlaneseq
    %v76 = vand.u32 %v75, 127
    %v77 = vadd.s32 %v76, 128
    %v78 = vadd.s32 %v76, 256
    %vm79 = vcmp.eq.s32.totalorder %v76, 32
    %vm80 = vcmp.eq.s32.totalorder %v77, 32
    %vm81 = vcmp.eq.s32.totalorder %v78, 32
    %v82 = vsel %vm79, 1.0, 0.0
    %v83 = vsel %vm80, 1.0, 0.0
    %v84 = vsel %vm81, 1.0, 0.0
    %85 = vst [vmem:[#allocation2] sm:$0xff] %v82
    %86 = vst [vmem:[#allocation2 + $0x8] sm:$0xff] %v83
    %87 = vst [vmem:[#allocation2 + $0x10] sm:$0xff] %v84
    %v88 = vld [vmem:[#allocation3] sm:$0xff]
    %vm89 = vcmask 261120
    %90 = vst.msk [vmem:[#allocation2] sm:$0xff] %vm89, %v88
    %v91 = vld [vmem:[#allocation6] sm:$0xff]
    %vm92 = vcmask 130048
    %93 = vst.msk [vmem:[#allocation2 + $0x8] sm:$0xff] %vm92, %v91
    %v94 = vld [vmem:[#allocation8] sm:$0xff]
    %vm95 = vcmask 64512
    %96 = vst.msk [vmem:[#allocation2 + $0x10] sm:$0xff] %vm95, %v94
    %v97 = vld [vmem:[#allocation2] sm:$0xff]
    %v98 = vld [vmem:[#allocation2 + $0x8] sm:$0xff]
    %v99 = vld [vmem:[#allocation2 + $0x10] sm:$0xff]
    %v100 = vld [vmem:[#allocation9] sm:$0xff]
    %v101 = vld [vmem:[#allocation9 + $0x8] sm:$0xff]
    %v102 = vld [vmem:[#allocation9 + $0x10] sm:$0xff]
    %v103 = vld [vmem:[#allocation9 + $0x18] sm:$0xff]
    %v104 = vld [vmem:[#allocation9 + $0x20] sm:$0xff]
    %v105 = vld [vmem:[#allocation9 + $0x28] sm:$0xff]
    %v106 = vld [vmem:[#allocation9 + $0x30] sm:$0xff]
    %v107 = vld [vmem:[#allocation9 + $0x38] sm:$0xff]
    %v108 = vld [vmem:[#allocation9 + $0x40] sm:$0xff]
    %v109 = vld [vmem:[#allocation9 + $0x48] sm:$0xff]
    %v110 = vld [vmem:[#allocation9 + $0x50] sm:$0xff]
    %v111 = vld [vmem:[#allocation9 + $0x58] sm:$0xff]
    %v112 = vld [vmem:[#allocation9 + $0x60] sm:$0xff]
    %v113 = vld [vmem:[#allocation9 + $0x68] sm:$0xff]
    %v114 = vld [vmem:[#allocation9 + $0x70] sm:$0xff]
    %v115 = vld [vmem:[#allocation9 + $0x78] sm:$0xff]
    %v116 = vld [vmem:[#allocation9 + $0x80] sm:$0xff]
    %v117 = vld [vmem:[#allocation9 + $0x88] sm:$0xff]
    %v118 = vld [vmem:[#allocation9 + $0x90] sm:$0xff]
    %v119 = vld [vmem:[#allocation9 + $0x98] sm:$0xff]
    %v120 = vld [vmem:[#allocation9 + $0xa0] sm:$0xff]
    %v121 = vld [vmem:[#allocation9 + $0xa8] sm:$0xff]
    %v122 = vld [vmem:[#allocation9 + $0xb0] sm:$0xff]
    %v123 = vld [vmem:[#allocation9 + $0xb8] sm:$0xff]
    %v124 = vld [vmem:[#allocation9 + $0xc0] sm:$0xff]
    %v125 = vld [vmem:[#allocation9 + $0xc8] sm:$0xff]
    %v126 = vld [vmem:[#allocation9 + $0xd0] sm:$0xff]
    %v127 = vld [vmem:[#allocation9 + $0xd8] sm:$0xff]
    %v128 = vld [vmem:[#allocation9 + $0xe0] sm:$0xff]
    %v129 = vld [vmem:[#allocation9 + $0xe8] sm:$0xff]
    %v130 = vld [vmem:[#allocation9 + $0xf0] sm:$0xff]
    %v131 = vld [vmem:[#allocation9 + $0xf8] sm:$0xff]
    %v132 = vld [vmem:[#allocation9 + $0x100] sm:$0xff]
    %v133 = vld [vmem:[#allocation9 + $0x108] sm:$0xff]
    %v134 = vld [vmem:[#allocation9 + $0x110] sm:$0xff]
    %v135 = vld [vmem:[#allocation9 + $0x118] sm:$0xff]
    %v136 = vld [vmem:[#allocation9 + $0x120] sm:$0xff]
    %v137 = vld [vmem:[#allocation9 + $0x128] sm:$0xff]
    %v138 = vld [vmem:[#allocation9 + $0x130] sm:$0xff]
    %v139 = vld [vmem:[#allocation9 + $0x138] sm:$0xff]
    %v140 = vld [vmem:[#allocation9 + $0x140] sm:$0xff]
    %v141 = vld [vmem:[#allocation9 + $0x148] sm:$0xff]
    %v142 = vld [vmem:[#allocation9 + $0x150] sm:$0xff]
    %v143 = vld [vmem:[#allocation9 + $0x158] sm:$0xff]
    %v144 = vld [vmem:[#allocation9 + $0x160] sm:$0xff]
    %v145 = vld [vmem:[#allocation9 + $0x168] sm:$0xff]
    %v146 = vld [vmem:[#allocation9 + $0x170] sm:$0xff]
    %v147 = vld [vmem:[#allocation9 + $0x178] sm:$0xff]
    %148 = vmatpush.msra.mxu0 %v115
    %149 = vmatpush.msra.mxu0 %v114
    %150 = vmatpush.msra.mxu0 %v113
    %151 = vmatpush.msra.mxu0 %v112
    %152 = vmatpush.msra.mxu0 %v111
    %153 = vmatpush.msra.mxu0 %v110
    %154 = vmatpush.msra.mxu0 %v109
    %155 = vmatpush.msra.mxu0 %v108
    %156 = vmatpush.msra.mxu0 %v107
    %157 = vmatpush.msra.mxu0 %v106
    %158 = vmatpush.msra.mxu0 %v105
    %159 = vmatpush.msra.mxu0 %v104
    %160 = vmatpush.msra.mxu0 %v103
    %161 = vmatpush.msra.mxu0 %v102
    %162 = vmatpush.msra.mxu0 %v101
    %163 = vmatpush.msra.mxu0 %v100
    %164 = vmatmul.f32.gmra.mxu0 %v97
    %v165 = vpop.f32.mrf.mxu0
    %v166 = vadd.f32 0.0, %v165
    %167 = vdwg.mxu0
    %168 = vmatpush.msra.mxu0 %v131
    %169 = vmatpush.msra.mxu0 %v130
    %170 = vmatpush.msra.mxu0 %v129
    %171 = vmatpush.msra.mxu0 %v128
    %172 = vmatpush.msra.mxu0 %v127
    %173 = vmatpush.msra.mxu0 %v126
    %174 = vmatpush.msra.mxu0 %v125
    %175 = vmatpush.msra.mxu0 %v124
    %176 = vmatpush.msra.mxu0 %v123
    %177 = vmatpush.msra.mxu0 %v122
    %178 = vmatpush.msra.mxu0 %v121
    %179 = vmatpush.msra.mxu0 %v120
    %180 = vmatpush.msra.mxu0 %v119
    %181 = vmatpush.msra.mxu0 %v118
    %182 = vmatpush.msra.mxu0 %v117
    %183 = vmatpush.msra.mxu0 %v116
    %184 = vmatmul.f32.gmra.mxu0 %v98
    %v185 = vpop.f32.mrf.mxu0
    %v186 = vadd.f32 %v166, %v185
    %187 = vdwg.mxu0
    %188 = vmatpush.msra.mxu0 %v147
    %189 = vmatpush.msra.mxu0 %v146
    %190 = vmatpush.msra.mxu0 %v145
    %191 = vmatpush.msra.mxu0 %v144
    %192 = vmatpush.msra.mxu0 %v143
    %193 = vmatpush.msra.mxu0 %v142
    %194 = vmatpush.msra.mxu0 %v141
    %195 = vmatpush.msra.mxu0 %v140
    %196 = vmatpush.msra.mxu0 %v139
    %197 = vmatpush.msra.mxu0 %v138
    %198 = vmatpush.msra.mxu0 %v137
    %199 = vmatpush.msra.mxu0 %v136
    %200 = vmatpush.msra.mxu0 %v135
    %201 = vmatpush.msra.mxu0 %v134
    %202 = vmatpush.msra.mxu0 %v133
    %203 = vmatpush.msra.mxu0 %v132
    %204 = vmatmul.f32.gmra.mxu0 %v99
    %v205 = vpop.f32.mrf.mxu0
    %v206 = vadd.f32 %v186, %v205
    %207 = vdwg.mxu0
    %208 = vst.msk [vmem:[#allocation11] sm:$0xff] %vm89, %v206
    // Predicated region
    $region34: #{ssm_forward.1} parent=1 // pred_check
      _
    $region35: #{ssm_forward.1} parent=1 // pred_check_branch
      %210 = sbr.rel (0) target = $region37
    $region36: #{ssm_forward.1} parent=1 // pred_region
      %212 = vsyncadd [#allocation5], 0
      %s214 = sshll.u32 [#allocation11], 4
      %s215 = int_to_ptr.vmem [resolvable:$true] %s214
      %s216 = sshll.u32 %s4, 4
      %s217 = int_to_ptr.hbm [resolvable:$true] %s216
      %219 = dma.vmem_to_hbm [thread:$0]  %s215, 128, %s217, [#allocation5]
    $region37: #{ssm_forward.1} parent=1 // pred_fallthru
      _
    // Predicated region
    $region38: #{ssm_forward.1} parent=1 // pred_check
      _
    $region39: #{ssm_forward.1} parent=1 // pred_check_branch
      %221 = sbr.rel (0) target = $region41
    $region40: #{ssm_forward.1} parent=1 // pred_region
      %223 = dma.done [#allocation5], 128
    $region41: #{ssm_forward.1} parent=1 // pred_fallthru
      _
    %224 = vsyncpa [#allocation4], 1
    %225 = vsyncpa [#allocation7], 1
    %226 = vsyncpa [#allocation10], 1
    %227 = vsyncpa [#allocation5], 1

</llo_original>
